<compile_context>
chip_gen: v5e
topology: v5e:2x2
jax: 0.10.0
libtpu: 0.0.40
codegen_flags: <defaults>
</compile_context>

<pallas_src>
import jax
import jax.numpy as jnp
from jax import lax
from jax.experimental import pallas as pl
from jax.experimental.pallas import tpu as pltpu


def _logreg_kernel(x_ref, w_ref, b_ref, o_ref):
    # x_ref: (TB, D) VMEM, w_ref: (1, D) VMEM, b_ref: (1, 1) SMEM, o_ref: (1, TB) VMEM
    # Contract the last (feature) dim of w with the last dim of the x tile:
    # (1, D) . (TB, D) -> (1, TB).  No per-tile x.T transpose, f32 accumulation.
    s = lax.dot_general(
        w_ref[...], x_ref[...],
        dimension_numbers=(((1,), (1,)), ((), ())),
        preferred_element_type=jnp.float32,
    ) + b_ref[0, 0]
    # sigmoid(s) = 1 / (1 + exp(-s)): exp + approx reciprocal both run on the EUP.
    o_ref[...] = pl.reciprocal(1.0 + jnp.exp(-s), approx=True)


def _choose_tb(B, D, itemsize):
    """Batch-tile rows: multiple of 128 (lane-dense output), per-buffer <= ~4 MiB."""
    budget_bytes = 4 * 1024 * 1024
    tb = (budget_bytes // max(1, D * itemsize)) // 128 * 128
    tb = max(tb, 128)
    padded_b = ((B + 127) // 128) * 128
    return min(tb, padded_b)


def logistic_regression_forward(x, w, b, *, tb=None):
    """x: (B, D), w: (1, D), b: (1,)  ->  sigmoid(w @ x.T + b) of shape (1, B), f32."""
    B, D = x.shape
    if D == 1:
        # TODO(synk): in_size == 1 elementwise branch (w * x + b) not implemented;
        # the matmul path below covers the in_size > 1 case of the module.
        raise NotImplementedError("in_size == 1 path not implemented")

    if tb is None:
        tb = _choose_tb(B, D, jnp.dtype(x.dtype).itemsize)

    # Pad batch so every grid step writes a full lane-dense (1, tb) output tile.
    Bp = ((B + tb - 1) // tb) * tb
    if Bp != B:
        x = jnp.pad(x, ((0, Bp - B), (0, 0)))

    b2d = jnp.asarray(b, dtype=jnp.float32).reshape(1, 1)

    out = pl.pallas_call(
        _logreg_kernel,
        out_shape=jax.ShapeDtypeStruct((1, Bp), jnp.float32),
        grid=(Bp // tb,),
        in_specs=[
            pl.BlockSpec((tb, D), lambda i: (i, 0)),                           # x tile (double-buffered DMA)
            pl.BlockSpec((1, D), lambda i: (0, 0)),                            # w, resident
            pl.BlockSpec((1, 1), lambda i: (0, 0), memory_space=pltpu.SMEM),   # b scalar
        ],
        out_specs=pl.BlockSpec((1, tb), lambda i: (0, i)),                     # lane-dense output tile
        compiler_params=pltpu.CompilerParams(
            dimension_semantics=("parallel",),   # lets v7x shard batch tiles across its 2 TCs
        ),
    )(x, w, b2d)
    return out[:, :B]


if __name__ == "__main__":
    key = jax.random.PRNGKey(0)
    kx, kw, kb, kx2 = jax.random.split(key, 4)

    # Small shapes consistent with the module: batch=8, input_size=32.
    B, D = 8, 32
    x = jax.random.normal(kx, (B, D), dtype=jnp.float32)
    w = jax.random.normal(kw, (1, D), dtype=jnp.float32)   # torch.randn((1, input_size))
    b = jax.random.normal(kb, (1,), dtype=jnp.float32)     # torch.randn(1)

    out = jax.block_until_ready(logistic_regression_forward(x, w, b))
    ref = jax.nn.sigmoid(jnp.dot(w, x.T) + b[0])
    assert out.shape == (1, B)
    # approx=True reciprocal -> relax tolerance vs exact sigmoid reference.
    assert jnp.allclose(out, ref, atol=2e-3, rtol=2e-3), "mismatch vs reference (small)"

    # Multi-tile grid path: batch tiled 128-wide -> 3 pipelined grid steps.
    B2 = 384
    x2 = jax.random.normal(kx2, (B2, D), dtype=jnp.float32)
    out2 = jax.block_until_ready(logistic_regression_forward(x2, w, b, tb=128))
    ref2 = jax.nn.sigmoid(jnp.dot(w, x2.T) + b[0])
    assert out2.shape == (1, B2)
    assert jnp.allclose(out2, ref2, atol=2e-3, rtol=2e-3), "mismatch vs reference (tiled)"

    print("KERNEL_OK")
</pallas_src>

<mosaic_0001>
module attributes {stable_mosaic.version = 11 : i64} {
  func.func @_logreg_kernel(%arg0: i32, %arg1: memref<128x32xf32, #tpu.memory_space<vmem>>, %arg2: memref<1x32xf32, #tpu.memory_space<vmem>>, %arg3: memref<1x1xf32, #tpu.memory_space<smem>>, %arg4: memref<1x128xf32, #tpu.memory_space<vmem>>) attributes {dimension_semantics = [#tpu.dimension_semantics<parallel>], iteration_bounds = array<i64: 1>, scalar_prefetch = 0 : i64, scratch_operands = 0 : i64, tpu.core_type = #tpu.core_type<tc>, window_params = [{transform_indices = @transform_0, window_bounds = array<i64: 128, 32>}, {pipeline_mode = #tpu.pipeline_mode<synchronous>, transform_indices = @transform_1, window_bounds = array<i64: 1, 32>}, {transform_indices = @transform_2, window_bounds = array<i64: 1, 1>}, {transform_indices = @transform_3, window_bounds = array<i64: 1, 128>}]} {
    %c0 = arith.constant 0 : index
    %c0_0 = arith.constant 0 : index
    %0 = vector.load %arg2[%c0, %c0_0] : memref<1x32xf32, #tpu.memory_space<vmem>>, vector<1x32xf32>
    %c0_1 = arith.constant 0 : index
    %c0_2 = arith.constant 0 : index
    %1 = vector.load %arg1[%c0_1, %c0_2] : memref<128x32xf32, #tpu.memory_space<vmem>>, vector<128x32xf32>
    %cst = arith.constant dense<0.000000e+00> : vector<1x128xf32>
    %2 = tpu.matmul %0, %1, %cst {dimension_numbers = #tpu.dot_dimension_numbers<[1], [1], [0], [0], [0, 0, 1, 0], [], []>} : vector<1x32xf32>, vector<128x32xf32>, vector<1x128xf32> -> vector<1x128xf32>
    %c0_3 = arith.constant 0 : index
    %c0_4 = arith.constant 0 : index
    %3 = memref.load %arg3[%c0_3, %c0_4] : memref<1x1xf32, #tpu.memory_space<smem>>
    %4 = vector.broadcast %3 : f32 to vector<1x128xf32>
    %5 = arith.addf %2, %4 : vector<1x128xf32>
    %cst_5 = arith.constant 0.000000e+00 : f32
    %6 = vector.broadcast %cst_5 : f32 to vector<1x128xf32>
    %7 = arith.subf %6, %5 : vector<1x128xf32>
    %8 = math.exp %7 : vector<1x128xf32>
    %cst_6 = arith.constant 1.000000e+00 : f32
    %9 = vector.broadcast %cst_6 : f32 to vector<1x128xf32>
    %10 = arith.addf %9, %8 : vector<1x128xf32>
    %11 = tpu.reciprocal %10 {approx = true} : vector<1x128xf32> -> vector<1x128xf32>
    %c0_7 = arith.constant 0 : index
    %c0_8 = arith.constant 0 : index
    %12 = vector.load %arg4[%c0_7, %c0_8] : memref<1x128xf32, #tpu.memory_space<vmem>>, vector<1x128xf32>
    tpu.vector_store %arg4[%c0_7, %c0_8], %11 {strides = array<i32>} : memref<1x128xf32, #tpu.memory_space<vmem>>, vector<1x128xf32>,
    return
  }
  func.func @transform_0(%arg0: i32) -> (i32, i32) {
    %c0_i32 = arith.constant 0 : i32
    %c0_i32_0 = arith.constant 0 : i32
    return %arg0, %c0_i32 : i32, i32
  }
  func.func @transform_1(%arg0: i32) -> (i32, i32) {
    %c0_i32 = arith.constant 0 : i32
    %c0_i32_0 = arith.constant 0 : i32
    %c0_i32_1 = arith.constant 0 : i32
    return %c0_i32, %c0_i32_0 : i32, i32
  }
  func.func @transform_2(%arg0: i32) -> (i32, i32) {
    %c0_i32 = arith.constant 0 : i32
    %c0_i32_0 = arith.constant 0 : i32
    %c0_i32_1 = arith.constant 0 : i32
    return %c0_i32, %c0_i32_0 : i32, i32
  }
  func.func @transform_3(%arg0: i32) -> (i32, i32) {
    %c0_i32 = arith.constant 0 : i32
    %c0_i32_0 = arith.constant 0 : i32
    return %c0_i32, %arg0 : i32, i32
  }
}

</mosaic_0001>

<llo_original>
// kernel: tpu_custom_call.1
$region0: #{tpu_custom_call.1}
  #allocation0 [shape = 'u32[]', space=smem, size = 0x4, offset = 0x4, fixed_abs, tag = 'smem constant byte address 0x4 - core index']
  #allocation1 [shape = 'u32[72,128]{1,0:T(1,128)}', space=vmem, size = 0x9000, scoped, tag = 'internal scratch']
  #allocation2 [shape = 'f32[1,1]{1,0:T(1,128)S(6)}', space=smem, size = 0x200, scoped, tag = 'scoped memory for tpu_custom_call.1']
  %s0 = inlined_call_operand.vmem [shape: f32[128,32], index: 0, kind: input, shape index: {}]
  %s1 = inlined_call_operand.vmem [shape: f32[1,32], index: 1, kind: input, shape index: {}]
  %s2 = inlined_call_operand.<no memory space> [shape: f32[1,1], index: 2, kind: input, shape index: {}]
  %s3 = inlined_call_operand.hbm [shape: f32[1,128], index: 3, kind: output, shape index: {}]
  %s4 = sld [smem:[#allocation0]]
  $region22: #{tpu_custom_call.1} parent=0
    _
  %s6 = ssub.s32 1, %s4
  %s7 = scalar_select 0, %s6, %s4
  %8 = sst [smem:[#allocation2]] %s2
  $region1: #{tpu_custom_call.1} parent=0
    #allocation3 [shape = 'u8[512]{0}', space=vmem, size = 0x400, scoped, tag = 'output window, operand 0, single buffered']
    #allocation4 [shape = 's32[1]{0}', space=sflag, size = 0x4, scoped, tag = 'scoped memory for tpu_custom_call.1']
    %9 = vsyncpa [#allocation4], 0
    // Predicated region
    $region2: #{tpu_custom_call.1} parent=1 // pred_check
      _
    $region3: #{tpu_custom_call.1} parent=1 // pred_check_branch
      %11 = sbr.rel (0) target = $region5
    $region4: #{tpu_custom_call.1} parent=1 // pred_region
      _
    $region5: #{tpu_custom_call.1} parent=1 // pred_fallthru
      _
    // Predicated region
    $region6: #{tpu_custom_call.1} parent=1 // pred_check
      _
    $region7: #{tpu_custom_call.1} parent=1 // pred_check_branch
      %13 = sbr.rel (0) target = $region9
    $region8: #{tpu_custom_call.1} parent=1 // pred_region
      _
    $region9: #{tpu_custom_call.1} parent=1 // pred_fallthru
      _
    // Predicated region
    $region10: #{tpu_custom_call.1} parent=1 // pred_check
      _
    $region11: #{tpu_custom_call.1} parent=1 // pred_check_branch
      %15 = sbr.rel (0) target = $region13
    $region12: #{tpu_custom_call.1} parent=1 // pred_region
      _
    $region13: #{tpu_custom_call.1} parent=1 // pred_fallthru
      _
    %v16 = vld [vmem:[%s1] sm:$0x1]
    %v17 = vld [vmem:[%s0] sm:$0xff]
    %v18 = vld [vmem:[%s0 + $0x8] sm:$0xff]
    %v19 = vld [vmem:[%s0 + $0x10] sm:$0xff]
    %v20 = vld [vmem:[%s0 + $0x18] sm:$0xff]
    %v21 = vld [vmem:[%s0 + $0x20] sm:$0xff]
    %v22 = vld [vmem:[%s0 + $0x28] sm:$0xff]
    %v23 = vld [vmem:[%s0 + $0x30] sm:$0xff]
    %v24 = vld [vmem:[%s0 + $0x38] sm:$0xff]
    %v25 = vld [vmem:[%s0 + $0x40] sm:$0xff]
    %v26 = vld [vmem:[%s0 + $0x48] sm:$0xff]
    %v27 = vld [vmem:[%s0 + $0x50] sm:$0xff]
    %v28 = vld [vmem:[%s0 + $0x58] sm:$0xff]
    %v29 = vld [vmem:[%s0 + $0x60] sm:$0xff]
    %v30 = vld [vmem:[%s0 + $0x68] sm:$0xff]
    %v31 = vld [vmem:[%s0 + $0x70] sm:$0xff]
    %v32 = vld [vmem:[%s0 + $0x78] sm:$0xff]
    %s33 = sld [smem:[#allocation2]]
    %v34 = vstv %s33
    %vm35 = vcmask 261120
    %v37 = vsel %vm35, %v16, 0
    %v40 = vsel %vm35, %v17, 0
    %v43 = vsel %vm35, %v18, 0
    %v46 = vsel %vm35, %v19, 0
    %v49 = vsel %vm35, %v20, 0
    %v52 = vsel %vm35, %v21, 0
    %v55 = vsel %vm35, %v22, 0
    %v58 = vsel %vm35, %v23, 0
    %v61 = vsel %vm35, %v24, 0
    %v64 = vsel %vm35, %v25, 0
    %v67 = vsel %vm35, %v26, 0
    %v70 = vsel %vm35, %v27, 0
    %v73 = vsel %vm35, %v28, 0
    %v76 = vsel %vm35, %v29, 0
    %v79 = vsel %vm35, %v30, 0
    %v82 = vsel %vm35, %v31, 0
    %v85 = vsel %vm35, %v32, 0
    %87 = vmatpush.xpose.msra.mxu0 %v85
    %88 = vmatpush.xpose.msra.mxu0 %v82
    %89 = vmatpush.xpose.msra.mxu0 %v79
    %90 = vmatpush.xpose.msra.mxu0 %v76
    %91 = vmatpush.xpose.msra.mxu0 %v73
    %92 = vmatpush.xpose.msra.mxu0 %v70
    %93 = vmatpush.xpose.msra.mxu0 %v67
    %94 = vmatpush.xpose.msra.mxu0 %v64
    %95 = vmatpush.xpose.msra.mxu0 %v61
    %96 = vmatpush.xpose.msra.mxu0 %v58
    %97 = vmatpush.xpose.msra.mxu0 %v55
    %98 = vmatpush.xpose.msra.mxu0 %v52
    %99 = vmatpush.xpose.msra.mxu0 %v49
    %100 = vmatpush.xpose.msra.mxu0 %v46
    %101 = vmatpush.xpose.msra.mxu0 %v43
    %102 = vmatpush.xpose.msra.mxu0 %v40
    %103 = vmatmul.f32.gmra.mxu0 %v37
    %v104 = vpop.f32.mrf.mxu0
    %v105 = vadd.f32 %v34, %v104
    %106 = vdwg.mxu0
    %v107 = vsub.f32 0.0, %v105
    %v108 = vmul.f32 %v107, 1.442695
    %v109 = vpow.pop %v108
    %v110 = vadd.f32 %v109, 1.0
    %v111 = vrcp.pop %v110
    %112 = vst [vmem:[#allocation3] sm:$0x1] %v111
    // Predicated region
    $region14: #{tpu_custom_call.1} parent=1 // pred_check
      _
    $region15: #{tpu_custom_call.1} parent=1 // pred_check_branch
      %114 = sbr.rel (0) target = $region17
    $region16: #{tpu_custom_call.1} parent=1 // pred_region
      %116 = vsyncadd [#allocation4], 0
      %s118 = sshll.u32 [#allocation3], 4
      %s119 = int_to_ptr.vmem [resolvable:$true] %s118
      %s120 = sshll.u32 %s3, 4
      %s121 = int_to_ptr.hbm [resolvable:$true] %s120
      %123 = dma.vmem_to_hbm [thread:$0]  %s119, 16, %s121, [#allocation4]
    $region17: #{tpu_custom_call.1} parent=1 // pred_fallthru
      _
    // Predicated region
    $region18: #{tpu_custom_call.1} parent=1 // pred_check
      _
    $region19: #{tpu_custom_call.1} parent=1 // pred_check_branch
      %125 = sbr.rel (0) target = $region21
    $region20: #{tpu_custom_call.1} parent=1 // pred_region
      %127 = dma.done [#allocation4], 16
    $region21: #{tpu_custom_call.1} parent=1 // pred_fallthru
      _
    %128 = vsyncpa [#allocation4], 1

</llo_original>
